<compile_context>
chip_gen: v6e
topology: v6e:2x2x1
jax: 0.10.0
libtpu: 0.0.40
codegen_flags: <defaults>
</compile_context>

<pallas_src>
import functools

import jax
import jax.numpy as jnp
from jax.experimental import pallas as pl
from jax.experimental.pallas import tpu as pltpu


def _round_up(x: int, m: int) -> int:
    return ((x + m - 1) // m) * m


def _resident_spec(block_shape, index_map):
    """BlockSpec for a grid-invariant operand: single-buffered to save VMEM."""
    try:
        return pl.BlockSpec(block_shape, index_map, pipeline_mode=pl.Buffered(1))
    except (TypeError, AttributeError):
        # Older Pallas without pipeline_mode support: default double buffering.
        return pl.BlockSpec(block_shape, index_map)


def _fused_head_kernel(x_ref, w_ref, b_ref, scores_ref, bbox_ref):
    """One row-tile: acc = x @ [W_cls_pad | W_bbox_pad] + b; split on a lane boundary."""
    acc = jnp.dot(x_ref[...], w_ref[...], preferred_element_type=jnp.float32)
    acc = acc + b_ref[...]
    cls_pad = scores_ref.shape[-1]            # static, 128-aligned
    scores_ref[...] = acc[:, :cls_pad].astype(scores_ref.dtype)
    bbox_ref[...] = acc[:, cls_pad:].astype(bbox_ref.dtype)


def fuse_params(w_cls, b_cls, w_bbox, b_bbox, *, use_bf16=False):
    """Fuse the two Linear layers ONCE (hoisted out of the per-call path).

    Layout of the fused output axis: [cls | pad to 128 | bbox | pad to 128], so
    the cls/bbox split inside the kernel lands on a lane boundary.
    Returns (w_fused (C, K_pad), b_fused (1, K_pad), num_classes, num_bbox).
    """
    c, num_classes = w_cls.shape
    num_bbox = w_bbox.shape[1]
    cls_pad = _round_up(num_classes, 128)
    bbox_pad = _round_up(num_bbox, 128)
    k_pad = cls_pad + bbox_pad

    w_fused = jnp.zeros((c, k_pad), jnp.float32)
    w_fused = w_fused.at[:, :num_classes].set(w_cls.astype(jnp.float32))
    w_fused = w_fused.at[:, cls_pad:cls_pad + num_bbox].set(w_bbox.astype(jnp.float32))

    b_fused = jnp.zeros((1, k_pad), jnp.float32)
    b_fused = b_fused.at[0, :num_classes].set(b_cls.astype(jnp.float32))
    b_fused = b_fused.at[0, cls_pad:cls_pad + num_bbox].set(b_bbox.astype(jnp.float32))

    if use_bf16:
        w_fused = w_fused.astype(jnp.bfloat16)   # bias stays f32 (added to f32 acc)
    return w_fused, b_fused, num_classes, num_bbox


@functools.partial(
    jax.jit,
    static_argnames=("num_classes", "num_bbox", "use_bf16", "out_dtype", "tile_n"),
)
def fastrcnn_predictor_fused(x, w_fused, b_fused, *, num_classes, num_bbox,
                             use_bf16=False, out_dtype=jnp.float32, tile_n=None):
    """FastRCNNPredictor.forward with pre-fused weights.

    x: (N, C) or (N, C, 1, 1); w_fused: (C, K_pad); b_fused: (1, K_pad).
    Returns (scores (N, num_classes), bbox_deltas (N, num_bbox)).
    For production sizes prefer use_bf16=True (and a bf16 out_dtype): the
    kernel is HBM-bound, f32 accumulation is kept on the MXU either way.
    """
    if x.ndim == 4:
        assert x.shape[2] == 1 and x.shape[3] == 1, \
            "FastRCNNPredictor expects spatial dims == [1, 1] for 4D input"
    x2d = x.reshape(x.shape[0], -1)                     # flatten(start_dim=1)

    n, c = x2d.shape
    cls_pad = _round_up(num_classes, 128)
    bbox_pad = _round_up(num_bbox, 128)
    k_pad = cls_pad + bbox_pad
    assert w_fused.shape == (c, k_pad) and b_fused.shape == (1, k_pad)

    if n == 0:                                          # empty ROI batch
        return (jnp.zeros((0, num_classes), out_dtype),
                jnp.zeros((0, num_bbox), out_dtype))

    if use_bf16:
        x2d = x2d.astype(jnp.bfloat16)
        w_fused = w_fused.astype(jnp.bfloat16)          # no-op if pre-cast

    if tile_n is None:
        # v6e sweet spot is 512 rows; tiny batches use a single full-extent
        # block (block dim == array dim is always legal, no edge tile).
        # On v7x pick tile_n so pl.cdiv(n, tile_n) is >= 2 and even to balance
        # the two TensorCores.
        tile_n = 512 if n >= 512 else (256 if n >= 256 else n)
    grid_n = pl.cdiv(n, tile_n)

    cost = pl.CostEstimate(
        flops=2 * n * c * k_pad,
        transcendentals=0,
        bytes_accessed=(x2d.size * x2d.dtype.itemsize
                        + w_fused.size * w_fused.dtype.itemsize
                        + b_fused.size * b_fused.dtype.itemsize
                        + n * k_pad * jnp.dtype(out_dtype).itemsize),
    )

    scores_p, bbox_p = pl.pallas_call(
        _fused_head_kernel,
        out_shape=(jax.ShapeDtypeStruct((n, cls_pad), out_dtype),
                   jax.ShapeDtypeStruct((n, bbox_pad), out_dtype)),
        grid_spec=pltpu.PrefetchScalarGridSpec(
            num_scalar_prefetch=0,
            grid=(grid_n,),
            in_specs=[
                # x: row-tiled, software-pipelined; full-C extent (never padded).
                pl.BlockSpec((tile_n, c), lambda i: (i, 0)),
                # W / b: constant index map -> VMEM-resident, single-buffered.
                _resident_spec((c, k_pad), lambda i: (0, 0)),
                _resident_spec((1, k_pad), lambda i: (0, 0)),
            ],
            out_specs=[
                pl.BlockSpec((tile_n, cls_pad), lambda i: (i, 0)),
                pl.BlockSpec((tile_n, bbox_pad), lambda i: (i, 0)),
            ],
        ),
        compiler_params=pltpu.CompilerParams(
            dimension_semantics=("parallel",),
            vmem_limit_bytes=32 * 1024 * 1024,
        ),
        cost_estimate=cost,
    )(x2d, w_fused, b_fused)

    # Only the pad columns are trimmed here (both outputs are lane-aligned in
    # the kernel); downstream code may instead consume the padded class dim
    # directly and mask the pad columns to skip even this copy.
    return scores_p[:, :num_classes], bbox_p[:, :num_bbox]


def _init_params(key, in_channels, num_classes):
    """Synthetic params matching nn.Linear init, stored transposed as (in, out)."""
    k1, k2, k3, k4 = jax.random.split(key, 4)
    bound = 1.0 / jnp.sqrt(in_channels)
    w_cls = jax.random.uniform(k1, (in_channels, num_classes),
                               minval=-bound, maxval=bound, dtype=jnp.float32)
    b_cls = jax.random.uniform(k2, (num_classes,),
                               minval=-bound, maxval=bound, dtype=jnp.float32)
    w_bbox = jax.random.uniform(k3, (in_channels, num_classes * 4),
                                minval=-bound, maxval=bound, dtype=jnp.float32)
    b_bbox = jax.random.uniform(k4, (num_classes * 4,),
                                minval=-bound, maxval=bound, dtype=jnp.float32)
    return w_cls, b_cls, w_bbox, b_bbox


if __name__ == "__main__":
    key = jax.random.PRNGKey(0)
    k_x, k_p = jax.random.split(key)

    batch = 2
    in_channels = 32
    num_classes = 8

    # 4D input (N, C, 1, 1) — the branch FastRCNNPredictor asserts on.
    x = jax.random.normal(k_x, (batch, in_channels, 1, 1), dtype=jnp.float32)
    w_cls, b_cls, w_bbox, b_bbox = _init_params(k_p, in_channels, num_classes)

    # Reference in plain JAX (same math as torch.nn.Linear).
    x2d = x.reshape(batch, -1)
    ref_scores = x2d @ w_cls + b_cls
    ref_bbox = x2d @ w_bbox + b_bbox

    # ---- f32 path (exact) -------------------------------------------------
    w_fused, b_fused, nc, nb = fuse_params(w_cls, b_cls, w_bbox, b_bbox)   # once
    scores, bbox_deltas = fastrcnn_predictor_fused(
        x, w_fused, b_fused, num_classes=nc, num_bbox=nb)
    jax.block_until_ready((scores, bbox_deltas))

    assert scores.shape == (batch, num_classes)
    assert bbox_deltas.shape == (batch, num_classes * 4)
    assert jnp.allclose(scores, ref_scores, atol=1e-5, rtol=1e-5)
    assert jnp.allclose(bbox_deltas, ref_bbox, atol=1e-5, rtol=1e-5)

    # ---- bf16 fast path (recommended for production, HBM-bound) -----------
    w_bf, b_bf, _, _ = fuse_params(w_cls, b_cls, w_bbox, b_bbox, use_bf16=True)
    scores_bf, bbox_bf = fastrcnn_predictor_fused(
        x, w_bf, b_bf, num_classes=nc, num_bbox=nb, use_bf16=True)
    jax.block_until_ready((scores_bf, bbox_bf))
    assert jnp.allclose(scores_bf, ref_scores, atol=2e-2, rtol=2e-2)
    assert jnp.allclose(bbox_bf, ref_bbox, atol=2e-2, rtol=2e-2)

    print("KERNEL_OK")
</pallas_src>

<mosaic_0001>
module attributes {stable_mosaic.version = 11 : i64} {
  func.func @_fused_head_kernel(%arg0: i32, %arg1: memref<2x32xf32, #tpu.memory_space<vmem>>, %arg2: memref<32x256xf32, #tpu.memory_space<vmem>>, %arg3: memref<1x256xf32, #tpu.memory_space<vmem>>, %arg4: memref<2x128xf32, #tpu.memory_space<vmem>>, %arg5: memref<2x128xf32, #tpu.memory_space<vmem>>) attributes {dimension_semantics = [#tpu.dimension_semantics<parallel>], iteration_bounds = array<i64: 1>, scalar_prefetch = 0 : i64, scratch_operands = 0 : i64, tpu.core_type = #tpu.core_type<tc>, window_params = [{transform_indices = @transform_0, window_bounds = array<i64: 2, 32>}, {pipeline_mode = #tpu.pipeline_mode<synchronous>, transform_indices = @transform_1, window_bounds = array<i64: 32, 256>}, {pipeline_mode = #tpu.pipeline_mode<synchronous>, transform_indices = @transform_2, window_bounds = array<i64: 1, 256>}, {transform_indices = @transform_3, window_bounds = array<i64: 2, 128>}, {transform_indices = @transform_4, window_bounds = array<i64: 2, 128>}]} {
    %c0 = arith.constant 0 : index
    %c0_0 = arith.constant 0 : index
    %0 = vector.load %arg1[%c0, %c0_0] : memref<2x32xf32, #tpu.memory_space<vmem>>, vector<2x32xf32>
    %c0_1 = arith.constant 0 : index
    %c0_2 = arith.constant 0 : index
    %1 = vector.load %arg2[%c0_1, %c0_2] : memref<32x256xf32, #tpu.memory_space<vmem>>, vector<32x256xf32>
    %cst = arith.constant dense<0.000000e+00> : vector<2x256xf32>
    %2 = tpu.matmul %0, %1, %cst {dimension_numbers = #tpu.dot_dimension_numbers<[1], [0], [0], [1], [0, 0, 1, 1], [], []>} : vector<2x32xf32>, vector<32x256xf32>, vector<2x256xf32> -> vector<2x256xf32>
    %c0_3 = arith.constant 0 : index
    %c0_4 = arith.constant 0 : index
    %3 = vector.load %arg3[%c0_3, %c0_4] : memref<1x256xf32, #tpu.memory_space<vmem>>, vector<1x256xf32>
    %4 = vector.broadcast %3 : vector<1x256xf32> to vector<2x256xf32>
    %5 = arith.addf %2, %4 : vector<2x256xf32>
    %6 = vector.extract_strided_slice %5 {offsets = [0, 0], sizes = [2, 128], strides = [1, 1]} : vector<2x256xf32> to vector<2x128xf32>
    %c0_5 = arith.constant 0 : index
    %c0_6 = arith.constant 0 : index
    %7 = vector.load %arg4[%c0_5, %c0_6] : memref<2x128xf32, #tpu.memory_space<vmem>>, vector<2x128xf32>
    tpu.vector_store %arg4[%c0_5, %c0_6], %6 {strides = array<i32>} : memref<2x128xf32, #tpu.memory_space<vmem>>, vector<2x128xf32>,
    %8 = vector.extract_strided_slice %5 {offsets = [0, 128], sizes = [2, 128], strides = [1, 1]} : vector<2x256xf32> to vector<2x128xf32>
    %c0_7 = arith.constant 0 : index
    %c0_8 = arith.constant 0 : index
    %9 = vector.load %arg5[%c0_7, %c0_8] : memref<2x128xf32, #tpu.memory_space<vmem>>, vector<2x128xf32>
    tpu.vector_store %arg5[%c0_7, %c0_8], %8 {strides = array<i32>} : memref<2x128xf32, #tpu.memory_space<vmem>>, vector<2x128xf32>,
    return
  }
  func.func @transform_0(%arg0: i32) -> (i32, i32) {
    %c0_i32 = arith.constant 0 : i32
    %c0_i32_0 = arith.constant 0 : i32
    return %arg0, %c0_i32 : i32, i32
  }
  func.func @transform_1(%arg0: i32) -> (i32, i32) {
    %c0_i32 = arith.constant 0 : i32
    %c0_i32_0 = arith.constant 0 : i32
    %c0_i32_1 = arith.constant 0 : i32
    return %c0_i32, %c0_i32_0 : i32, i32
  }
  func.func @transform_2(%arg0: i32) -> (i32, i32) {
    %c0_i32 = arith.constant 0 : i32
    %c0_i32_0 = arith.constant 0 : i32
    %c0_i32_1 = arith.constant 0 : i32
    return %c0_i32, %c0_i32_0 : i32, i32
  }
  func.func @transform_3(%arg0: i32) -> (i32, i32) {
    %c0_i32 = arith.constant 0 : i32
    %c0_i32_0 = arith.constant 0 : i32
    return %arg0, %c0_i32 : i32, i32
  }
  func.func @transform_4(%arg0: i32) -> (i32, i32) {
    %c0_i32 = arith.constant 0 : i32
    %c0_i32_0 = arith.constant 0 : i32
    return %arg0, %c0_i32 : i32, i32
  }
}

</mosaic_0001>

<llo_original>
// kernel: fastrcnn_predictor_fused.1
$region0: #{fastrcnn_predictor_fused.1}
  #allocation0 [shape = 'u32[]', space=smem, size = 0x4, offset = 0x4, fixed_abs, tag = 'smem constant byte address 0x4 - core index']
  #allocation1 [shape = 'u32[144,128]{1,0:T(1,128)}', space=vmem, size = 0x12000, scoped, tag = 'internal scratch']
  %s0 = inlined_call_operand.hbm [shape: f32[2,32], index: 0, kind: input, shape index: {}]
  %s1 = inlined_call_operand.hbm [shape: f32[32,256], index: 1, kind: input, shape index: {}]
  %s2 = inlined_call_operand.vmem [shape: f32[1,256], index: 2, kind: input, shape index: {}]
  %s3 = inlined_call_operand.hbm [shape: f32[2,128], index: 3, kind: output, shape index: {0}]
  %s4 = inlined_call_operand.hbm [shape: f32[2,128], index: 4, kind: output, shape index: {1}]
  %5 = xla_tuple %s3, %s4
  %s6 = sld [smem:[#allocation0]]
  $region38: #{fastrcnn_predictor_fused.1} parent=0
    _
  %s8 = ssub.s32 1, %s6
  %s9 = scalar_select 0, %s8, %s6
  $region1: #{fastrcnn_predictor_fused.1} parent=0
    #allocation2 [shape = 'u8[1024]{0}', space=vmem, size = 0x400, scoped, tag = 'input window, operand 0, single buffered']
    #allocation3 [shape = 's32[1]{0}', space=sflag, size = 0x4, scoped, tag = 'scoped memory for fastrcnn_predictor_fused.1']
    #allocation4 [shape = 's32[1]{0}', space=sflag, size = 0x4, scoped, tag = 'scoped memory for fastrcnn_predictor_fused.1']
    #allocation5 [shape = 'u8[32768]{0}', space=vmem, size = 0x8000, scoped, tag = 'input window, operand 1, single buffered']
    #allocation6 [shape = 's32[1]{0}', space=sflag, size = 0x4, scoped, tag = 'scoped memory for fastrcnn_predictor_fused.1']
    #allocation7 [shape = 'u8[1024]{0}', space=vmem, size = 0x400, scoped, tag = 'output window, operand 0, single buffered']
    #allocation8 [shape = 'u8[1024]{0}', space=vmem, size = 0x400, scoped, tag = 'output window, operand 1, single buffered']
    #allocation9 [shape = 's32[1]{0}', space=sflag, size = 0x4, scoped, tag = 'scoped memory for fastrcnn_predictor_fused.1']
    %10 = vsyncpa [#allocation3], 0
    %11 = vsyncpa [#allocation6], 0
    %12 = vsyncpa [#allocation4], 0
    %13 = vsyncpa [#allocation9], 0
    // Predicated region
    $region2: #{fastrcnn_predictor_fused.1} parent=1 // pred_check
      _
    $region3: #{fastrcnn_predictor_fused.1} parent=1 // pred_check_branch
      %15 = sbr.rel (0) target = $region5
    $region4: #{fastrcnn_predictor_fused.1} parent=1 // pred_region
      %s17 = ssub.s32 32, 32
      %18 = vsyncadd [#allocation3], %s17
      %s20 = sshll.u32 [#allocation2], 4
      %s21 = int_to_ptr.vmem [resolvable:$true] %s20
      %23 = dma.hbm_to_vmem [thread:$0]  %s0, 32, %s21, [#allocation3]
    $region5: #{fastrcnn_predictor_fused.1} parent=1 // pred_fallthru
      _
    // Predicated region
    $region6: #{fastrcnn_predictor_fused.1} parent=1 // pred_check
      _
    $region7: #{fastrcnn_predictor_fused.1} parent=1 // pred_check_branch
      %25 = sbr.rel (0) target = $region9
    $region8: #{fastrcnn_predictor_fused.1} parent=1 // pred_region
      %s27 = ssub.s32 1024, 1024
      %28 = vsyncadd [#allocation6], %s27
      %s29 = sshll.u32 [#allocation5], 4
      %s30 = int_to_ptr.vmem [resolvable:$true] %s29
      %35 = dma.hbm_to_vmem [thread:$0]  %s1, 1024, %s30, [#allocation6], 256, 256, 16
    $region9: #{fastrcnn_predictor_fused.1} parent=1 // pred_fallthru
      _
    // Predicated region
    $region10: #{fastrcnn_predictor_fused.1} parent=1 // pred_check
      _
    $region11: #{fastrcnn_predictor_fused.1} parent=1 // pred_check_branch
      %37 = sbr.rel (0) target = $region13
    $region12: #{fastrcnn_predictor_fused.1} parent=1 // pred_region
      _
    $region13: #{fastrcnn_predictor_fused.1} parent=1 // pred_fallthru
      _
    // Predicated region
    $region14: #{fastrcnn_predictor_fused.1} parent=1 // pred_check
      _
    $region15: #{fastrcnn_predictor_fused.1} parent=1 // pred_check_branch
      %39 = sbr.rel (0) target = $region17
    $region16: #{fastrcnn_predictor_fused.1} parent=1 // pred_region
      %40 = dma.done [#allocation3], 32
    $region17: #{fastrcnn_predictor_fused.1} parent=1 // pred_fallthru
      _
    // Predicated region
    $region18: #{fastrcnn_predictor_fused.1} parent=1 // pred_check
      _
    $region19: #{fastrcnn_predictor_fused.1} parent=1 // pred_check_branch
      %42 = sbr.rel (0) target = $region21
    $region20: #{fastrcnn_predictor_fused.1} parent=1 // pred_region
      %43 = dma.done [#allocation6], 1024
    $region21: #{fastrcnn_predictor_fused.1} parent=1 // pred_fallthru
      _
    %v44 = vld [vmem:[#allocation2] sm:$0x3]
    %v45 = vld [vmem:[#allocation5] sm:$0xff]
    %v46 = vld [vmem:[#allocation5 + $0x8] sm:$0xff]
    %v47 = vld [vmem:[#allocation5 + $0x10] sm:$0xff]
    %v48 = vld [vmem:[#allocation5 + $0x18] sm:$0xff]
    %v49 = vld [vmem:[#allocation5 + $0x20] sm:$0xff]
    %v50 = vld [vmem:[#allocation5 + $0x28] sm:$0xff]
    %v51 = vld [vmem:[#allocation5 + $0x30] sm:$0xff]
    %v52 = vld [vmem:[#allocation5 + $0x38] sm:$0xff]
    %v53 = vld [vmem:[%s2] sm:$0x3]
    %v55 = vlaneseq
    %v56 = vshrl.u32 %v55, 7
    %v57 = vsub.s32 0, %v56
    %v58 = vrot.slane %v53, %v57
    %v59 = vlaneseq
    %v60 = vshrl.u32 %v59, 7
    %v61 = vsub.s32 1, %v60
    %v62 = vrot.slane %v53, %v61
    %vm65 = vcmask 261120
    %v67 = vsel %vm65, %v44, 0
    %69 = vmatprep.subr.mxu0 0.0
    %70 = vmatpush1.msra.mxu0 0.0
    %71 = vmatprep.subr.mxu0 0.0
    %72 = vmatpush1.msra.mxu0 0.0
    %73 = vmatprep.subr.mxu0 0.0
    %74 = vmatpush1.msra.mxu0 0.0
    %75 = vmatprep.subr.mxu0 0.0
    %76 = vmatpush1.msra.mxu0 0.0
    %77 = vmatprep.subr.mxu0 0.0
    %78 = vmatpush1.msra.mxu0 0.0
    %79 = vmatprep.subr.mxu0 0.0
    %80 = vmatpush1.msra.mxu0 0.0
    %81 = vmatprep.subr.mxu0 0.0
    %82 = vmatpush1.msra.mxu0 0.0
    %83 = vmatprep.subr.mxu0 0.0
    %84 = vmatpush1.msra.mxu0 0.0
    %85 = vmatprep.subr.mxu0 0.0
    %86 = vmatpush1.msra.mxu0 0.0
    %87 = vmatprep.subr.mxu0 0.0
    %88 = vmatpush1.msra.mxu0 0.0
    %89 = vmatprep.subr.mxu0 0.0
    %90 = vmatpush1.msra.mxu0 0.0
    %91 = vmatprep.subr.mxu0 0.0
    %92 = vmatpush1.msra.mxu0 0.0
    %93 = vmatprep.subr.mxu0 %v52
    %94 = vmatpush1.msra.mxu0 %v51
    %95 = vmatprep.subr.mxu0 %v50
    %96 = vmatpush1.msra.mxu0 %v49
    %97 = vmatprep.subr.mxu0 %v48
    %98 = vmatpush1.msra.mxu0 %v47
    %99 = vmatprep.subr.mxu0 %v46
    %100 = vmatpush1.msra.mxu0 %v45
    %101 = vmatprep.subr.mxu0 0.0
    %102 = vmatpush2.msra.mxu0 0.0
    %103 = vmatprep.subr.mxu0 0.0
    %104 = vmatpush2.msra.mxu0 0.0
    %105 = vmatprep.subr.mxu0 0.0
    %106 = vmatpush2.msra.mxu0 0.0
    %107 = vmatprep.subr.mxu0 0.0
    %108 = vmatpush2.msra.mxu0 0.0
    %109 = vmatprep.subr.mxu0 0.0
    %110 = vmatpush2.msra.mxu0 0.0
    %111 = vmatprep.subr.mxu0 0.0
    %112 = vmatpush2.msra.mxu0 0.0
    %113 = vmatprep.subr.mxu0 0.0
    %114 = vmatpush2.msra.mxu0 0.0
    %115 = vmatprep.subr.mxu0 0.0
    %116 = vmatpush2.msra.mxu0 0.0
    %117 = vmatprep.subr.mxu0 0.0
    %118 = vmatpush2.msra.mxu0 0.0
    %119 = vmatprep.subr.mxu0 0.0
    %120 = vmatpush2.msra.mxu0 0.0
    %121 = vmatprep.subr.mxu0 0.0
    %122 = vmatpush2.msra.mxu0 0.0
    %123 = vmatprep.subr.mxu0 0.0
    %124 = vmatpush2.msra.mxu0 0.0
    %125 = vmatprep.subr.mxu0 0.0
    %126 = vmatpush2.msra.mxu0 0.0
    %127 = vmatprep.subr.mxu0 0.0
    %128 = vmatpush2.msra.mxu0 0.0
    %129 = vmatprep.subr.mxu0 0.0
    %130 = vmatpush2.msra.mxu0 0.0
    %131 = vmatprep.subr.mxu0 0.0
    %132 = vmatpush2.msra.mxu0 0.0
    %133 = vmatprep.mubr.f32.mxu0 0.0
    %134 = vmatmul.mubr.f32.gmra.mxu0 %v67
    %v135 = vpop.f32.mrf.mxu0
    %v136 = vadd.f32 %v58, %v135
    %v137 = vpop.f32.mrf.mxu0
    %v138 = vadd.f32 %v62, %v137
    %139 = vdwg.mxu0
    %140 = vst [vmem:[#allocation7] sm:$0x3] %v136
    %141 = vst [vmem:[#allocation8] sm:$0x3] %v138
    // Predicated region
    $region22: #{fastrcnn_predictor_fused.1} parent=1 // pred_check
      _
    $region23: #{fastrcnn_predictor_fused.1} parent=1 // pred_check_branch
      %143 = sbr.rel (0) target = $region25
    $region24: #{fastrcnn_predictor_fused.1} parent=1 // pred_region
      %s145 = ssub.s32 32, 32
      %146 = vsyncadd [#allocation4], %s145
      %s148 = sshll.u32 [#allocation7], 4
      %s149 = int_to_ptr.vmem [resolvable:$true] %s148
      %151 = dma.vmem_to_hbm [thread:$0]  %s149, 32, %s3, [#allocation4]
    $region25: #{fastrcnn_predictor_fused.1} parent=1 // pred_fallthru
      _
    // Predicated region
    $region26: #{fastrcnn_predictor_fused.1} parent=1 // pred_check
      _
    $region27: #{fastrcnn_predictor_fused.1} parent=1 // pred_check_branch
      %153 = sbr.rel (0) target = $region29
    $region28: #{fastrcnn_predictor_fused.1} parent=1 // pred_region
      %s155 = ssub.s32 32, 32
      %156 = vsyncadd [#allocation9], %s155
      %s158 = sshll.u32 [#allocation8], 4
      %s159 = int_to_ptr.vmem [resolvable:$true] %s158
      %161 = dma.vmem_to_hbm [thread:$0]  %s159, 32, %s4, [#allocation9]
    $region29: #{fastrcnn_predictor_fused.1} parent=1 // pred_fallthru
      _
    // Predicated region
    $region30: #{fastrcnn_predictor_fused.1} parent=1 // pred_check
      _
    $region31: #{fastrcnn_predictor_fused.1} parent=1 // pred_check_branch
      %163 = sbr.rel (0) target = $region33
    $region32: #{fastrcnn_predictor_fused.1} parent=1 // pred_region
      %164 = dma.done [#allocation4], 32
    $region33: #{fastrcnn_predictor_fused.1} parent=1 // pred_fallthru
      _
    // Predicated region
    $region34: #{fastrcnn_predictor_fused.1} parent=1 // pred_check
      _
    $region35: #{fastrcnn_predictor_fused.1} parent=1 // pred_check_branch
      %166 = sbr.rel (0) target = $region37
    $region36: #{fastrcnn_predictor_fused.1} parent=1 // pred_region
      %167 = dma.done [#allocation9], 32
    $region37: #{fastrcnn_predictor_fused.1} parent=1 // pred_fallthru
      _
    %168 = vsyncpa [#allocation3], 1
    %169 = vsyncpa [#allocation6], 1
    %170 = vsyncpa [#allocation4], 1
    %171 = vsyncpa [#allocation9], 1

</llo_original>
